<compile_context>
chip_gen: v7x
topology: tpu7x:2x2x1
jax: 0.10.0
libtpu: 0.0.40
codegen_flags: <defaults>
</compile_context>

<pallas_src>
import functools

import jax
import jax.numpy as jnp
from jax.experimental import pallas as pl
from jax.experimental.pallas import tpu as pltpu


_PAD = 8      # zero lanes prepended to the time axis (>= 6 needed; 8 for roundness)
_GMARGIN = 4  # zero-lane margin carried by g_tcn's first conv output (= max dilated shift)


# --------------------------------- kernel ----------------------------------

def _dtaad_kernel(x_ref, wl_ref, wg1_ref, wg2_ref, wfcn_ref, bias_ref,
                  decw_ref, decb_ref, x1_ref, x2_ref, *, n_window, pad):
    W = n_window
    P = pad
    GM = _GMARGIN

    x_pad = x_ref[...]                 # (bbF, P + W); lanes [0, P) are zero (causal fill)
    bias = bias_ref[...]               # (bbF, 4): l, g1, g2, fcn bias columns
    bl, bg1, bg2, bfcn = bias[:, 0:1], bias[:, 1:2], bias[:, 2:3], bias[:, 3:4]
    wfcn = wfcn_ref[...]               # (bbF, bbF): block-diag (I + W_fcn), residual folded
    decw = decw_ref[...]               # (2, W): decoder1 / decoder2 time weights
    decb = decb_ref[...]               # (1, 2): decoder biases

    def conv(v_pad, in_m, out_m, w_comb, b_col, kernel_size, dilation):
        # Causal Conv1d as ONE matmul: tap shifts are static lane slices of the
        # zero-left-padded input; slices are stacked along the (aligned) sublane axis.
        out_w = out_m + W
        taps = []
        for k in range(kernel_size):
            start = in_m - out_m - (kernel_size - 1 - k) * dilation
            taps.append(v_pad[:, start:start + out_w])
        stacked = jnp.concatenate(taps, axis=0)                       # (K*bbF, out_w)
        return jnp.dot(w_comb, stacked,
                       preferred_element_type=jnp.float32) + b_col

    # ---- l_tcn: causal conv k=4 d=1 + ReLU (one MXU matmul) -----------------
    l_atts = jnp.maximum(conv(x_pad, P, 0, wl_ref[...], bl, 4, 1), 0.0)   # (bbF, W)

    # ---- c1 = l_atts + fcn(l_atts)  (identity folded into wfcn) ------------
    c1 = jnp.dot(wfcn, l_atts, preferred_element_type=jnp.float32) + bfcn

    # ---- decoder1: weighted time reduction on VPU/XLU + sigmoid ------------
    x1 = jax.nn.sigmoid(jnp.sum(c1 * decw[0:1, :], axis=1, keepdims=True)
                        + decb[:, 0:1])                                   # (bbF, 1)

    # ---- callback: src2 = src + x1 broadcast over time (keep pad lanes 0) --
    sig_in = (jax.lax.broadcasted_iota(jnp.int32, (1, P + W), 1) >= P
              ).astype(jnp.float32)
    src2_pad = x_pad + x1 * sig_in

    # ---- g_tcn: conv k=3 d=1 (+ReLU, keep GM zero margin) then k=3 d=2 -----
    sig_g = (jax.lax.broadcasted_iota(jnp.int32, (1, GM + W), 1) >= GM
             ).astype(jnp.float32)
    g1 = jnp.maximum(conv(src2_pad, P, GM, wg1_ref[...], bg1, 3, 1) * sig_g, 0.0)
    c2 = jnp.maximum(conv(g1, GM, 0, wg2_ref[...], bg2, 3, 2), 0.0)       # (bbF, W)

    # ---- decoder2(c2 + fcn(c2)) ---------------------------------------------
    c2p = jnp.dot(wfcn, c2, preferred_element_type=jnp.float32) + bfcn
    x2 = jax.nn.sigmoid(jnp.sum(c2p * decw[1:2, :], axis=1, keepdims=True)
                        + decb[:, 1:2])                                   # (bbF, 1)

    x1_ref[...] = x1
    x2_ref[...] = x2


# -------------------------------- wrapper ----------------------------------

def _pick_batch_block(B, F):
    """Largest batch block <= 8 that divides B and keeps sublane blocks 8-aligned."""
    for bb in range(min(B, 8), 0, -1):
        if B % bb == 0 and ((bb * F) % 8 == 0 or bb == B):
            return bb
    return B


def dtaad_transformer_forward(src, params):
    """src: (B, feats, n_window) float32 (PyTorch NCL). Returns (x1, x2), each (B, 1, feats)."""
    B, F, W = src.shape
    bb = _pick_batch_block(B, F)        # batch elements per grid step
    nblk = B // bb
    bbf = bb * F

    # Feature-major rows (b, f) x time, left-padded with zero lanes for causal fill.
    x_fm = src.reshape(B * F, W).astype(jnp.float32)
    x_pad = jnp.pad(x_fm, ((0, 0), (_PAD, 0)))

    eye_b = jnp.eye(bb, dtype=jnp.float32)

    def comb_conv(w):                   # (F_out, F_in, K) -> (bbF, K*bbF), tap-major blocks
        return jnp.concatenate(
            [jnp.kron(eye_b, w[:, :, k].astype(jnp.float32))
             for k in range(w.shape[2])], axis=1)

    def col(v):                         # (F,) -> (bbF, 1), tiled over the batch block
        return jnp.tile(v.astype(jnp.float32).reshape(F, 1), (bb, 1))

    w_l = comb_conv(params['l_conv_w'])
    w_g1 = comb_conv(params['g_conv1_w'])
    w_g2 = comb_conv(params['g_conv2_w'])
    w_fcn = jnp.kron(eye_b, jnp.eye(F, dtype=jnp.float32)
                     + params['fcn_w'].astype(jnp.float32))      # residual folded
    bias_cols = jnp.concatenate(
        [col(params['l_conv_b']), col(params['g_conv1_b']),
         col(params['g_conv2_b']), col(params['fcn_b'])], axis=1)          # (bbF, 4)
    dec_w = jnp.concatenate([params['dec1_w'].reshape(1, W),
                             params['dec2_w'].reshape(1, W)], axis=0).astype(jnp.float32)
    dec_b = jnp.concatenate([params['dec1_b'].reshape(1, 1),
                             params['dec2_b'].reshape(1, 1)], axis=1).astype(jnp.float32)

    kernel = functools.partial(_dtaad_kernel, n_window=W, pad=_PAD)
    const = lambda a: pl.BlockSpec(a.shape, lambda i: (0, 0))   # grid-invariant weights

    x1, x2 = pl.pallas_call(
        kernel,
        out_shape=[jax.ShapeDtypeStruct((B * F, 1), jnp.float32),
                   jax.ShapeDtypeStruct((B * F, 1), jnp.float32)],
        grid=(nblk,),
        in_specs=[pl.BlockSpec((bbf, _PAD + W), lambda i: (i, 0)),
                  const(w_l), const(w_g1), const(w_g2), const(w_fcn),
                  const(bias_cols), const(dec_w), const(dec_b)],
        out_specs=[pl.BlockSpec((bbf, 1), lambda i: (i, 0)),
                   pl.BlockSpec((bbf, 1), lambda i: (i, 0))],
        compiler_params=pltpu.CompilerParams(dimension_semantics=("parallel",)),
    )(x_pad, w_l, w_g1, w_g2, w_fcn, bias_cols, dec_w, dec_b)

    return x1.reshape(B, 1, F), x2.reshape(B, 1, F)


# -------------------------- pure-JAX reference -----------------------------

def ref_forward(src, params):
    def causal_conv_ncl(v, w, b, dilation):        # v: (B, F, W), w: (F_out, F_in, K)
        K = w.shape[2]
        pad = (K - 1) * dilation
        vp = jnp.pad(v, ((0, 0), (0, 0), (pad, 0)))
        out = jax.lax.conv_general_dilated(
            vp, w, window_strides=(1,), padding='VALID', rhs_dilation=(dilation,),
            dimension_numbers=('NCH', 'OIH', 'NCH'))
        return out + b[None, :, None]

    relu = lambda a: jnp.maximum(a, 0.0)
    fcn = lambda a: a @ params['fcn_w'].T + params['fcn_b']

    l_atts = jnp.transpose(relu(causal_conv_ncl(src, params['l_conv_w'], params['l_conv_b'], 1)),
                           (0, 2, 1))
    c1 = l_atts + fcn(l_atts)
    x1 = jax.nn.sigmoid(jnp.transpose(c1, (0, 2, 1)) @ params['dec1_w'].T + params['dec1_b'])
    src2 = src + x1                                 # (B, F, W) + (B, F, 1)
    g = relu(causal_conv_ncl(src2, params['g_conv1_w'], params['g_conv1_b'], 1))
    g = relu(causal_conv_ncl(g, params['g_conv2_w'], params['g_conv2_b'], 2))
    c2 = jnp.transpose(g, (0, 2, 1))
    x2 = jax.nn.sigmoid(jnp.transpose(c2 + fcn(c2), (0, 2, 1)) @ params['dec2_w'].T + params['dec2_b'])
    return jnp.transpose(x1, (0, 2, 1)), jnp.transpose(x2, (0, 2, 1))


# ----------------------------- parameter init ------------------------------

def init_params(key, feats, window):
    ks = jax.random.split(key, 12)
    n = lambda k, shape, s: (s * jax.random.normal(k, shape)).astype(jnp.float32)
    return {
        'l_conv_w':  n(ks[0], (feats, feats, 4), 0.01),   # matches .normal_(0, 0.01) init
        'l_conv_b':  n(ks[1], (feats,), 0.1),
        'g_conv1_w': n(ks[2], (feats, feats, 3), 0.01),
        'g_conv1_b': n(ks[3], (feats,), 0.1),
        'g_conv2_w': n(ks[4], (feats, feats, 3), 0.01),
        'g_conv2_b': n(ks[5], (feats,), 0.1),
        'fcn_w':     n(ks[6], (feats, feats), 0.1),
        'fcn_b':     n(ks[7], (feats,), 0.1),
        'dec1_w':    n(ks[8], (1, window), 0.1),
        'dec1_b':    n(ks[9], (1,), 0.1),
        'dec2_w':    n(ks[10], (1, window), 0.1),
        'dec2_b':    n(ks[11], (1,), 0.1),
    }


if __name__ == "__main__":
    B, F, W = 2, 8, 10      # n_window is fixed at 10 by the module
    key = jax.random.PRNGKey(0)
    kp, kx = jax.random.split(key)
    params = init_params(kp, F, W)
    src = jax.random.normal(kx, (B, F, W), jnp.float32)   # PyTorch NCL layout

    x1, x2 = dtaad_transformer_forward(src, params)
    jax.block_until_ready((x1, x2))

    r1, r2 = ref_forward(src, params)
    assert x1.shape == (B, 1, F) and x2.shape == (B, 1, F)
    # f32; tolerance covers possible MXU multi-pass vs XLA precision differences.
    assert jnp.allclose(x1, r1, atol=5e-3, rtol=5e-3)
    assert jnp.allclose(x2, r2, atol=5e-3, rtol=5e-3)
    print("KERNEL_OK")
</pallas_src>

<mosaic_0001>
module attributes {stable_mosaic.version = 11 : i64} {
  func.func @_dtaad_kernel(%arg0: i32, %arg1: memref<16x18xf32, #tpu.memory_space<vmem>>, %arg2: memref<16x64xf32, #tpu.memory_space<vmem>>, %arg3: memref<16x48xf32, #tpu.memory_space<vmem>>, %arg4: memref<16x48xf32, #tpu.memory_space<vmem>>, %arg5: memref<16x16xf32, #tpu.memory_space<vmem>>, %arg6: memref<16x4xf32, #tpu.memory_space<vmem>>, %arg7: memref<2x10xf32, #tpu.memory_space<vmem>>, %arg8: memref<1x2xf32, #tpu.memory_space<vmem>>, %arg9: memref<16x1xf32, #tpu.memory_space<vmem>>, %arg10: memref<16x1xf32, #tpu.memory_space<vmem>>) attributes {dimension_semantics = [#tpu.dimension_semantics<parallel>], iteration_bounds = array<i64: 1>, scalar_prefetch = 0 : i64, scratch_operands = 0 : i64, tpu.core_type = #tpu.core_type<tc>, window_params = [{transform_indices = @transform_0, window_bounds = array<i64: 16, 18>}, {pipeline_mode = #tpu.pipeline_mode<synchronous>, transform_indices = @transform_1, window_bounds = array<i64: 16, 64>}, {pipeline_mode = #tpu.pipeline_mode<synchronous>, transform_indices = @transform_2, window_bounds = array<i64: 16, 48>}, {pipeline_mode = #tpu.pipeline_mode<synchronous>, transform_indices = @transform_3, window_bounds = array<i64: 16, 48>}, {pipeline_mode = #tpu.pipeline_mode<synchronous>, transform_indices = @transform_4, window_bounds = array<i64: 16, 16>}, {pipeline_mode = #tpu.pipeline_mode<synchronous>, transform_indices = @transform_5, window_bounds = array<i64: 16, 4>}, {pipeline_mode = #tpu.pipeline_mode<synchronous>, transform_indices = @transform_6, window_bounds = array<i64: 2, 10>}, {pipeline_mode = #tpu.pipeline_mode<synchronous>, transform_indices = @transform_7, window_bounds = array<i64: 1, 2>}, {transform_indices = @transform_8, window_bounds = array<i64: 16, 1>}, {transform_indices = @transform_9, window_bounds = array<i64: 16, 1>}]} {
    %c0 = arith.constant 0 : index
    %c0_0 = arith.constant 0 : index
    %0 = vector.load %arg1[%c0, %c0_0] : memref<16x18xf32, #tpu.memory_space<vmem>>, vector<16x18xf32>
    %c0_1 = arith.constant 0 : index
    %c0_2 = arith.constant 0 : index
    %1 = vector.load %arg6[%c0_1, %c0_2] : memref<16x4xf32, #tpu.memory_space<vmem>>, vector<16x4xf32>
    %2 = vector.extract_strided_slice %1 {offsets = [0, 0], sizes = [16, 1], strides = [1, 1]} : vector<16x4xf32> to vector<16x1xf32>
    %3 = vector.extract_strided_slice %1 {offsets = [0, 1], sizes = [16, 1], strides = [1, 1]} : vector<16x4xf32> to vector<16x1xf32>
    %4 = vector.extract_strided_slice %1 {offsets = [0, 2], sizes = [16, 1], strides = [1, 1]} : vector<16x4xf32> to vector<16x1xf32>
    %5 = vector.extract_strided_slice %1 {offsets = [0, 3], sizes = [16, 1], strides = [1, 1]} : vector<16x4xf32> to vector<16x1xf32>
    %c0_3 = arith.constant 0 : index
    %c0_4 = arith.constant 0 : index
    %6 = vector.load %arg5[%c0_3, %c0_4] : memref<16x16xf32, #tpu.memory_space<vmem>>, vector<16x16xf32>
    %c0_5 = arith.constant 0 : index
    %c0_6 = arith.constant 0 : index
    %7 = vector.load %arg7[%c0_5, %c0_6] : memref<2x10xf32, #tpu.memory_space<vmem>>, vector<2x10xf32>
    %c0_7 = arith.constant 0 : index
    %c0_8 = arith.constant 0 : index
    %8 = vector.load %arg8[%c0_7, %c0_8] : memref<1x2xf32, #tpu.memory_space<vmem>>, vector<1x2xf32>
    %c0_9 = arith.constant 0 : index
    %c0_10 = arith.constant 0 : index
    %9 = vector.load %arg2[%c0_9, %c0_10] : memref<16x64xf32, #tpu.memory_space<vmem>>, vector<16x64xf32>
    %10 = vector.extract_strided_slice %0 {offsets = [0, 5], sizes = [16, 10], strides = [1, 1]} : vector<16x18xf32> to vector<16x10xf32>
    %11 = vector.extract_strided_slice %0 {offsets = [0, 6], sizes = [16, 10], strides = [1, 1]} : vector<16x18xf32> to vector<16x10xf32>
    %12 = vector.extract_strided_slice %0 {offsets = [0, 7], sizes = [16, 10], strides = [1, 1]} : vector<16x18xf32> to vector<16x10xf32>
    %13 = vector.extract_strided_slice %0 {offsets = [0, 8], sizes = [16, 10], strides = [1, 1]} : vector<16x18xf32> to vector<16x10xf32>
    %14 = tpu.concatenate %10, %11, %12, %13 in 0 : vector<16x10xf32>, vector<16x10xf32>, vector<16x10xf32>, vector<16x10xf32> -> vector<64x10xf32>
    %cst = arith.constant dense<0.000000e+00> : vector<16x10xf32>
    %15 = tpu.matmul %9, %14, %cst {dimension_numbers = #tpu.dot_dimension_numbers<[1], [0], [0], [1], [0, 0, 1, 1], [], []>} : vector<16x64xf32>, vector<64x10xf32>, vector<16x10xf32> -> vector<16x10xf32>
    %16 = vector.broadcast %2 : vector<16x1xf32> to vector<16x10xf32>
    %17 = arith.addf %15, %16 : vector<16x10xf32>
    %cst_11 = arith.constant 0.000000e+00 : f32
    %18 = vector.broadcast %cst_11 : f32 to vector<16x10xf32>
    %19 = arith.maximumf %17, %18 : vector<16x10xf32>
    %cst_12 = arith.constant dense<0.000000e+00> : vector<16x10xf32>
    %20 = tpu.matmul %6, %19, %cst_12 {dimension_numbers = #tpu.dot_dimension_numbers<[1], [0], [0], [1], [0, 0, 1, 1], [], []>} : vector<16x16xf32>, vector<16x10xf32>, vector<16x10xf32> -> vector<16x10xf32>
    %21 = vector.broadcast %5 : vector<16x1xf32> to vector<16x10xf32>
    %22 = arith.addf %20, %21 : vector<16x10xf32>
    %23 = vector.extract_strided_slice %7 {offsets = [0, 0], sizes = [1, 10], strides = [1, 1]} : vector<2x10xf32> to vector<1x10xf32>
    %24 = vector.broadcast %23 : vector<1x10xf32> to vector<16x10xf32>
    %25 = arith.mulf %22, %24 : vector<16x10xf32>
    %cst_13 = arith.constant dense<0.000000e+00> : vector<16xf32>
    %26 = vector.multi_reduction <add>, %25, %cst_13 [1] : vector<16x10xf32> to vector<16xf32>
    %27 = vector.shape_cast %26 : vector<16xf32> to vector<16x1xf32>
    %28 = vector.extract_strided_slice %8 {offsets = [0, 0], sizes = [1, 1], strides = [1, 1]} : vector<1x2xf32> to vector<1x1xf32>
    %29 = vector.broadcast %28 : vector<1x1xf32> to vector<16x1xf32>
    %30 = arith.addf %27, %29 : vector<16x1xf32>
    %31 = arith.negf %30 : vector<16x1xf32>
    %32 = math.exp %31 : vector<16x1xf32>
    %cst_14 = arith.constant 1.000000e+00 : f32
    %33 = vector.broadcast %cst_14 : f32 to vector<16x1xf32>
    %34 = arith.addf %33, %32 : vector<16x1xf32>
    %35 = arith.divf %33, %34 : vector<16x1xf32>
    %36 = tpu.iota {dimensions = array<i32: 1>} : vector<1x18xi32>
    %c8_i32 = arith.constant 8 : i32
    %37 = vector.broadcast %c8_i32 : i32 to vector<1x18xi32>
    %38 = arith.cmpi sge, %36, %37 : vector<1x18xi32>
    %39 = arith.extui %38 : vector<1x18xi1> to vector<1x18xi32>
    %40 = arith.sitofp %39 : vector<1x18xi32> to vector<1x18xf32>
    %41 = vector.broadcast %35 : vector<16x1xf32> to vector<16x18xf32>
    %42 = vector.broadcast %40 : vector<1x18xf32> to vector<16x18xf32>
    %43 = arith.mulf %41, %42 : vector<16x18xf32>
    %44 = arith.addf %0, %43 : vector<16x18xf32>
    %45 = tpu.iota {dimensions = array<i32: 1>} : vector<1x14xi32>
    %c4_i32 = arith.constant 4 : i32
    %46 = vector.broadcast %c4_i32 : i32 to vector<1x14xi32>
    %47 = arith.cmpi sge, %45, %46 : vector<1x14xi32>
    %48 = arith.extui %47 : vector<1x14xi1> to vector<1x14xi32>
    %49 = arith.sitofp %48 : vector<1x14xi32> to vector<1x14xf32>
    %c0_15 = arith.constant 0 : index
    %c0_16 = arith.constant 0 : index
    %50 = vector.load %arg3[%c0_15, %c0_16] : memref<16x48xf32, #tpu.memory_space<vmem>>, vector<16x48xf32>
    %51 = vector.extract_strided_slice %44 {offsets = [0, 2], sizes = [16, 14], strides = [1, 1]} : vector<16x18xf32> to vector<16x14xf32>
    %52 = vector.extract_strided_slice %44 {offsets = [0, 3], sizes = [16, 14], strides = [1, 1]} : vector<16x18xf32> to vector<16x14xf32>
    %53 = vector.extract_strided_slice %44 {offsets = [0, 4], sizes = [16, 14], strides = [1, 1]} : vector<16x18xf32> to vector<16x14xf32>
    %54 = tpu.concatenate %51, %52, %53 in 0 : vector<16x14xf32>, vector<16x14xf32>, vector<16x14xf32> -> vector<48x14xf32>
    %cst_17 = arith.constant dense<0.000000e+00> : vector<16x14xf32>
    %55 = tpu.matmul %50, %54, %cst_17 {dimension_numbers = #tpu.dot_dimension_numbers<[1], [0], [0], [1], [0, 0, 1, 1], [], []>} : vector<16x48xf32>, vector<48x14xf32>, vector<16x14xf32> -> vector<16x14xf32>
    %56 = vector.broadcast %3 : vector<16x1xf32> to vector<16x14xf32>
    %57 = arith.addf %55, %56 : vector<16x14xf32>
    %58 = vector.broadcast %49 : vector<1x14xf32> to vector<16x14xf32>
    %59 = arith.mulf %57, %58 : vector<16x14xf32>
    %cst_18 = arith.constant 0.000000e+00 : f32
    %60 = vector.broadcast %cst_18 : f32 to vector<16x14xf32>
    %61 = arith.maximumf %59, %60 : vector<16x14xf32>
    %c0_19 = arith.constant 0 : index
    %c0_20 = arith.constant 0 : index
    %62 = vector.load %arg4[%c0_19, %c0_20] : memref<16x48xf32, #tpu.memory_space<vmem>>, vector<16x48xf32>
    %63 = vector.extract_strided_slice %61 {offsets = [0, 0], sizes = [16, 10], strides = [1, 1]} : vector<16x14xf32> to vector<16x10xf32>
    %64 = vector.extract_strided_slice %61 {offsets = [0, 2], sizes = [16, 10], strides = [1, 1]} : vector<16x14xf32> to vector<16x10xf32>
    %65 = vector.extract_strided_slice %61 {offsets = [0, 4], sizes = [16, 10], strides = [1, 1]} : vector<16x14xf32> to vector<16x10xf32>
    %66 = tpu.concatenate %63, %64, %65 in 0 : vector<16x10xf32>, vector<16x10xf32>, vector<16x10xf32> -> vector<48x10xf32>
    %cst_21 = arith.constant dense<0.000000e+00> : vector<16x10xf32>
    %67 = tpu.matmul %62, %66, %cst_21 {dimension_numbers = #tpu.dot_dimension_numbers<[1], [0], [0], [1], [0, 0, 1, 1], [], []>} : vector<16x48xf32>, vector<48x10xf32>, vector<16x10xf32> -> vector<16x10xf32>
    %68 = vector.broadcast %4 : vector<16x1xf32> to vector<16x10xf32>
    %69 = arith.addf %67, %68 : vector<16x10xf32>
    %cst_22 = arith.constant 0.000000e+00 : f32
    %70 = vector.broadcast %cst_22 : f32 to vector<16x10xf32>
    %71 = arith.maximumf %69, %70 : vector<16x10xf32>
    %cst_23 = arith.constant dense<0.000000e+00> : vector<16x10xf32>
    %72 = tpu.matmul %6, %71, %cst_23 {dimension_numbers = #tpu.dot_dimension_numbers<[1], [0], [0], [1], [0, 0, 1, 1], [], []>} : vector<16x16xf32>, vector<16x10xf32>, vector<16x10xf32> -> vector<16x10xf32>
    %73 = vector.broadcast %5 : vector<16x1xf32> to vector<16x10xf32>
    %74 = arith.addf %72, %73 : vector<16x10xf32>
    %75 = vector.extract_strided_slice %7 {offsets = [1, 0], sizes = [1, 10], strides = [1, 1]} : vector<2x10xf32> to vector<1x10xf32>
    %76 = vector.broadcast %75 : vector<1x10xf32> to vector<16x10xf32>
    %77 = arith.mulf %74, %76 : vector<16x10xf32>
    %cst_24 = arith.constant dense<0.000000e+00> : vector<16xf32>
    %78 = vector.multi_reduction <add>, %77, %cst_24 [1] : vector<16x10xf32> to vector<16xf32>
    %79 = vector.shape_cast %78 : vector<16xf32> to vector<16x1xf32>
    %80 = vector.extract_strided_slice %8 {offsets = [0, 1], sizes = [1, 1], strides = [1, 1]} : vector<1x2xf32> to vector<1x1xf32>
    %81 = vector.broadcast %80 : vector<1x1xf32> to vector<16x1xf32>
    %82 = arith.addf %79, %81 : vector<16x1xf32>
    %83 = arith.negf %82 : vector<16x1xf32>
    %84 = math.exp %83 : vector<16x1xf32>
    %cst_25 = arith.constant 1.000000e+00 : f32
    %85 = vector.broadcast %cst_25 : f32 to vector<16x1xf32>
    %86 = arith.addf %85, %84 : vector<16x1xf32>
    %87 = arith.divf %85, %86 : vector<16x1xf32>
    %c0_26 = arith.constant 0 : index
    %c0_27 = arith.constant 0 : index
    %88 = vector.load %arg9[%c0_26, %c0_27] : memref<16x1xf32, #tpu.memory_space<vmem>>, vector<16x1xf32>
    tpu.vector_store %arg9[%c0_26, %c0_27], %35 {strides = array<i32>} : memref<16x1xf32, #tpu.memory_space<vmem>>, vector<16x1xf32>,
    %c0_28 = arith.constant 0 : index
    %c0_29 = arith.constant 0 : index
    %89 = vector.load %arg10[%c0_28, %c0_29] : memref<16x1xf32, #tpu.memory_space<vmem>>, vector<16x1xf32>
    tpu.vector_store %arg10[%c0_28, %c0_29], %87 {strides = array<i32>} : memref<16x1xf32, #tpu.memory_space<vmem>>, vector<16x1xf32>,
    return
  }
  func.func @transform_0(%arg0: i32) -> (i32, i32) {
    %c0_i32 = arith.constant 0 : i32
    %c0_i32_0 = arith.constant 0 : i32
    return %arg0, %c0_i32 : i32, i32
  }
  func.func @transform_1(%arg0: i32) -> (i32, i32) {
    %c0_i32 = arith.constant 0 : i32
    %c0_i32_0 = arith.constant 0 : i32
    %c0_i32_1 = arith.constant 0 : i32
    return %c0_i32, %c0_i32_0 : i32, i32
  }
  func.func @transform_2(%arg0: i32) -> (i32, i32) {
    %c0_i32 = arith.constant 0 : i32
    %c0_i32_0 = arith.constant 0 : i32
    %c0_i32_1 = arith.constant 0 : i32
    return %c0_i32, %c0_i32_0 : i32, i32
  }
  func.func @transform_3(%arg0: i32) -> (i32, i32) {
    %c0_i32 = arith.constant 0 : i32
    %c0_i32_0 = arith.constant 0 : i32
    %c0_i32_1 = arith.constant 0 : i32
    return %c0_i32, %c0_i32_0 : i32, i32
  }
  func.func @transform_4(%arg0: i32) -> (i32, i32) {
    %c0_i32 = arith.constant 0 : i32
    %c0_i32_0 = arith.constant 0 : i32
    %c0_i32_1 = arith.constant 0 : i32
    return %c0_i32, %c0_i32_0 : i32, i32
  }
  func.func @transform_5(%arg0: i32) -> (i32, i32) {
    %c0_i32 = arith.constant 0 : i32
    %c0_i32_0 = arith.constant 0 : i32
    %c0_i32_1 = arith.constant 0 : i32
    return %c0_i32, %c0_i32_0 : i32, i32
  }
  func.func @transform_6(%arg0: i32) -> (i32, i32) {
    %c0_i32 = arith.constant 0 : i32
    %c0_i32_0 = arith.constant 0 : i32
    %c0_i32_1 = arith.constant 0 : i32
    return %c0_i32, %c0_i32_0 : i32, i32
  }
  func.func @transform_7(%arg0: i32) -> (i32, i32) {
    %c0_i32 = arith.constant 0 : i32
    %c0_i32_0 = arith.constant 0 : i32
    %c0_i32_1 = arith.constant 0 : i32
    return %c0_i32, %c0_i32_0 : i32, i32
  }
  func.func @transform_8(%arg0: i32) -> (i32, i32) {
    %c0_i32 = arith.constant 0 : i32
    %c0_i32_0 = arith.constant 0 : i32
    return %arg0, %c0_i32 : i32, i32
  }
  func.func @transform_9(%arg0: i32) -> (i32, i32) {
    %c0_i32 = arith.constant 0 : i32
    %c0_i32_0 = arith.constant 0 : i32
    return %arg0, %c0_i32 : i32, i32
  }
}

</mosaic_0001>

<llo_original>
// kernel: tpu_custom_call.1
$region0: #{tpu_custom_call.1}
  #allocation0 [shape = 'u32[]', space=smem, size = 0x4, offset = 0x4, fixed_abs, tag = 'smem constant byte address 0x4 - core index']
  #allocation1 [shape = 'u32[144,128]{1,0:T(1,128)}', space=vmem, size = 0x12000, scoped, tag = 'internal scratch']
  %s0 = inlined_call_operand.vmem [shape: f32[16,18], index: 0, kind: input, shape index: {}]
  %s1 = inlined_call_operand.hbm [shape: f32[16,64], index: 1, kind: input, shape index: {}]
  %s2 = inlined_call_operand.hbm [shape: f32[16,48], index: 2, kind: input, shape index: {}]
  %s3 = inlined_call_operand.hbm [shape: f32[16,48], index: 3, kind: input, shape index: {}]
  %s4 = inlined_call_operand.vmem [shape: f32[16,16], index: 4, kind: input, shape index: {}]
  %s5 = inlined_call_operand.vmem [shape: f32[16,4], index: 5, kind: input, shape index: {}]
  %s6 = inlined_call_operand.vmem [shape: f32[2,10], index: 6, kind: input, shape index: {}]
  %s7 = inlined_call_operand.vmem [shape: f32[1,2], index: 7, kind: input, shape index: {}]
  %s8 = inlined_call_operand.vmem [shape: f32[16,1], index: 8, kind: output, shape index: {0}]
  %s9 = inlined_call_operand.vmem [shape: f32[16,1], index: 9, kind: output, shape index: {1}]
  %10 = xla_tuple %s8, %s9
  %s11 = sld [smem:[#allocation0]]
  $region62: #{tpu_custom_call.1} parent=0
    _
  %s13 = ssub.s32 1, %s11
  %s14 = scalar_select 0, %s13, %s11
  $region1: #{tpu_custom_call.1} parent=0
    #allocation2 [shape = 'u8[8192]{0}', space=vmem, size = 0x2000, scoped, tag = 'input window, operand 1, single buffered']
    #allocation3 [shape = 's32[1]{0}', space=sflag, size = 0x4, scoped, tag = 'scoped memory for tpu_custom_call.1']
    #allocation4 [shape = 'u8[8192]{0}', space=vmem, size = 0x2000, scoped, tag = 'input window, operand 2, single buffered']
    #allocation5 [shape = 's32[1]{0}', space=sflag, size = 0x4, scoped, tag = 'scoped memory for tpu_custom_call.1']
    #allocation6 [shape = 'u8[8192]{0}', space=vmem, size = 0x2000, scoped, tag = 'input window, operand 3, single buffered']
    %15 = vsyncpa [#allocation3], 0
    %16 = vsyncpa [#allocation5], 0
    // Predicated region
    $region2: #{tpu_custom_call.1} parent=1 // pred_check
      _
    $region3: #{tpu_custom_call.1} parent=1 // pred_check_branch
      %18 = sbr.rel (0) target = $region5
    $region4: #{tpu_custom_call.1} parent=1 // pred_region
      _
    $region5: #{tpu_custom_call.1} parent=1 // pred_fallthru
      _
    // Predicated region
    $region6: #{tpu_custom_call.1} parent=1 // pred_check
      _
    $region7: #{tpu_custom_call.1} parent=1 // pred_check_branch
      %20 = sbr.rel (0) target = $region9
    $region8: #{tpu_custom_call.1} parent=1 // pred_region
      %s22 = ssub.s32 256, 256
      %23 = vsyncadd [#allocation3], %s22
      %s24 = sshll.u32 [#allocation2], 4
      %s25 = int_to_ptr.vmem [resolvable:$true] %s24
      %30 = dma.hbm_to_vmem [thread:$0]  %s1, 256, %s25, [#allocation3], 128, 128, 8
    $region9: #{tpu_custom_call.1} parent=1 // pred_fallthru
      _
    // Predicated region
    $region10: #{tpu_custom_call.1} parent=1 // pred_check
      _
    $region11: #{tpu_custom_call.1} parent=1 // pred_check_branch
      %32 = sbr.rel (0) target = $region13
    $region12: #{tpu_custom_call.1} parent=1 // pred_region
      %s34 = ssub.s32 256, 256
      %35 = vsyncadd [#allocation5], %s34
      %s36 = sshll.u32 [#allocation4], 4
      %s37 = int_to_ptr.vmem [resolvable:$true] %s36
      %42 = dma.hbm_to_vmem [thread:$0]  %s2, 256, %s37, [#allocation5], 128, 128, 8
    $region13: #{tpu_custom_call.1} parent=1 // pred_fallthru
      _
    // Predicated region
    $region14: #{tpu_custom_call.1} parent=1 // pred_check
      _
    $region15: #{tpu_custom_call.1} parent=1 // pred_check_branch
      %44 = sbr.rel (0) target = $region17
    $region16: #{tpu_custom_call.1} parent=1 // pred_region
      %s46 = ssub.s32 256, 256
      %47 = vsyncadd [#allocation5], %s46
      %s48 = sshll.u32 [#allocation6], 4
      %s49 = int_to_ptr.vmem [resolvable:$true] %s48
      %54 = dma.hbm_to_vmem [thread:$0]  %s3, 256, %s49, [#allocation5], 128, 128, 8
    $region17: #{tpu_custom_call.1} parent=1 // pred_fallthru
      _
    // Predicated region
    $region18: #{tpu_custom_call.1} parent=1 // pred_check
      _
    $region19: #{tpu_custom_call.1} parent=1 // pred_check_branch
      %56 = sbr.rel (0) target = $region21
    $region20: #{tpu_custom_call.1} parent=1 // pred_region
      _
    $region21: #{tpu_custom_call.1} parent=1 // pred_fallthru
      _
    // Predicated region
    $region22: #{tpu_custom_call.1} parent=1 // pred_check
      _
    $region23: #{tpu_custom_call.1} parent=1 // pred_check_branch
      %58 = sbr.rel (0) target = $region25
    $region24: #{tpu_custom_call.1} parent=1 // pred_region
      _
    $region25: #{tpu_custom_call.1} parent=1 // pred_fallthru
      _
    // Predicated region
    $region26: #{tpu_custom_call.1} parent=1 // pred_check
      _
    $region27: #{tpu_custom_call.1} parent=1 // pred_check_branch
      %60 = sbr.rel (0) target = $region29
    $region28: #{tpu_custom_call.1} parent=1 // pred_region
      _
    $region29: #{tpu_custom_call.1} parent=1 // pred_fallthru
      _
    // Predicated region
    $region30: #{tpu_custom_call.1} parent=1 // pred_check
      _
    $region31: #{tpu_custom_call.1} parent=1 // pred_check_branch
      %62 = sbr.rel (0) target = $region33
    $region32: #{tpu_custom_call.1} parent=1 // pred_region
      _
    $region33: #{tpu_custom_call.1} parent=1 // pred_fallthru
      _
    // Predicated region
    $region34: #{tpu_custom_call.1} parent=1 // pred_check
      _
    $region35: #{tpu_custom_call.1} parent=1 // pred_check_branch
      %64 = sbr.rel (0) target = $region37
    $region36: #{tpu_custom_call.1} parent=1 // pred_region
      %65 = dma.done [#allocation3], 256
    $region37: #{tpu_custom_call.1} parent=1 // pred_fallthru
      _
    // Predicated region
    $region38: #{tpu_custom_call.1} parent=1 // pred_check
      _
    $region39: #{tpu_custom_call.1} parent=1 // pred_check_branch
      %67 = sbr.rel (0) target = $region41
    $region40: #{tpu_custom_call.1} parent=1 // pred_region
      %68 = dma.done [#allocation5], 256
    $region41: #{tpu_custom_call.1} parent=1 // pred_fallthru
      _
    // Predicated region
    $region42: #{tpu_custom_call.1} parent=1 // pred_check
      _
    $region43: #{tpu_custom_call.1} parent=1 // pred_check_branch
      %70 = sbr.rel (0) target = $region45
    $region44: #{tpu_custom_call.1} parent=1 // pred_region
      %71 = dma.done [#allocation5], 256
    $region45: #{tpu_custom_call.1} parent=1 // pred_fallthru
      _
    %v72 = vld [vmem:[%s0] sm:$0xff]
    %v73 = vld [vmem:[%s0 + $0x8] sm:$0xff]
    %v74 = vld [vmem:[%s5] sm:$0xff]
    %v75 = vld [vmem:[%s5 + $0x8] sm:$0xff]
    %v76 = vld [vmem:[%s4] sm:$0xff]
    %v77 = vld [vmem:[%s4 + $0x8] sm:$0xff]
    %v78 = vld [vmem:[%s6] sm:$0x3]
    %v79 = vld [vmem:[%s7] sm:$0x1]
    %v80 = vld [vmem:[#allocation2] sm:$0xff]
    %v81 = vld [vmem:[#allocation2 + $0x8] sm:$0xff]
    %84 = vrot.lane.b32.xlu0 %v72, 127
    %v85 = vpop.permute.xlu0 %84
    %86 = vrot.lane.b32.xlu0 %v73, 127
    %v87 = vpop.permute.xlu0 %86
    %88 = vrot.lane.b32.xlu0 %v72, 126
    %v89 = vpop.permute.xlu0 %88
    %90 = vrot.lane.b32.xlu0 %v73, 126
    %v91 = vpop.permute.xlu0 %90
    %92 = vrot.lane.b32.xlu0 %v72, 125
    %v93 = vpop.permute.xlu0 %92
    %94 = vrot.lane.b32.xlu0 %v73, 125
    %v95 = vpop.permute.xlu0 %94
    %97 = vset.pattern.permute.xlu0 0
    %98 = vperm.xlu0 %97, %v74
    %v99 = vpop.permute.xlu0 %98
    %102 = vset.pattern.permute.xlu0 0
    %103 = vperm.xlu0 %102, %v75
    %v104 = vpop.permute.xlu0 %103
    %106 = vrot.lane.b32.xlu0 %v72, 123
    %v107 = vpop.permute.xlu0 %106
    %108 = vrot.lane.b32.xlu0 %v73, 123
    %v109 = vpop.permute.xlu0 %108
    %110 = vrot.lane.b32.xlu0 %v85, 123
    %v111 = vpop.permute.xlu0 %110
    %112 = vrot.lane.b32.xlu0 %v87, 123
    %v113 = vpop.permute.xlu0 %112
    %114 = vrot.lane.b32.xlu0 %v89, 123
    %v115 = vpop.permute.xlu0 %114
    %116 = vrot.lane.b32.xlu0 %v91, 123
    %v117 = vpop.permute.xlu0 %116
    %118 = vrot.lane.b32.xlu0 %v93, 123
    %v119 = vpop.permute.xlu0 %118
    %120 = vrot.lane.b32.xlu0 %v95, 123
    %v121 = vpop.permute.xlu0 %120
    %vm130 = vcmask 523264
    %v132 = vsel %vm130, %v80, 0
    %v135 = vsel %vm130, %v81, 0
    %137 = vmatprep.subr.mxu0 0.0
    %138 = vmatpush1.msra.mxu0 %v107
    %139 = vmatprep.subr.mxu0 0.0
    %140 = vmatpush1.msra.mxu0 %v109
    %141 = vmatprep.subr.mxu0 0.0
    %142 = vmatpush1.msra.mxu0 %v111
    %143 = vmatprep.subr.mxu0 0.0
    %144 = vmatpush1.msra.mxu0 %v113
    %145 = vmatprep.subr.mxu0 0.0
    %146 = vmatpush1.msra.mxu0 %v115
    %147 = vmatprep.subr.mxu0 0.0
    %148 = vmatpush1.msra.mxu0 %v117
    %149 = vmatprep.subr.mxu0 0.0
    %150 = vmatpush1.msra.mxu0 %v119
    %151 = vmatprep.subr.mxu0 0.0
    %152 = vmatpush1.msra.mxu0 %v121
    %153 = vmatprep.subr.mxu0 0.0
    %154 = vmatpush1.msra.mxu0 0.0
    %155 = vmatprep.subr.mxu0 0.0
    %156 = vmatpush1.msra.mxu0 0.0
    %157 = vmatprep.subr.mxu0 0.0
    %158 = vmatpush1.msra.mxu0 0.0
    %159 = vmatprep.subr.mxu0 0.0
    %160 = vmatpush1.msra.mxu0 0.0
    %161 = vmatprep.subr.mxu0 0.0
    %162 = vmatpush1.msra.mxu0 0.0
    %163 = vmatprep.subr.mxu0 0.0
    %164 = vmatpush1.msra.mxu0 0.0
    %165 = vmatprep.subr.mxu0 0.0
    %166 = vmatpush1.msra.mxu0 0.0
    %167 = vmatprep.subr.mxu0 0.0
    %168 = vmatpush1.msra.mxu0 0.0
    %169 = vmatprep.subr.mxu0 0.0
    %170 = vmatpush1.msra.mxu0 0.0
    %171 = vmatprep.subr.mxu0 0.0
    %172 = vmatpush1.msra.mxu0 0.0
    %173 = vmatprep.subr.mxu0 0.0
    %174 = vmatpush1.msra.mxu0 0.0
    %175 = vmatprep.subr.mxu0 0.0
    %176 = vmatpush1.msra.mxu0 0.0
    %177 = vmatprep.subr.mxu0 0.0
    %178 = vmatpush1.msra.mxu0 0.0
    %179 = vmatprep.subr.mxu0 0.0
    %180 = vmatpush1.msra.mxu0 0.0
    %181 = vmatprep.subr.mxu0 0.0
    %182 = vmatpush1.msra.mxu0 0.0
    %183 = vmatprep.subr.mxu0 0.0
    %184 = vmatpush1.msra.mxu0 0.0
    %185 = vmatprep.subr.mxu0 0.0
    %186 = vmatpush1.msra.mxu0 0.0
    %187 = vmatprep.subr.mxu0 0.0
    %188 = vmatpush1.msra.mxu0 0.0
    %189 = vmatprep.subr.mxu0 0.0
    %190 = vmatpush1.msra.mxu0 0.0
    %191 = vmatprep.subr.mxu0 0.0
    %192 = vmatpush1.msra.mxu0 0.0
    %193 = vmatprep.subr.mxu0 0.0
    %194 = vmatpush1.msra.mxu0 0.0
    %195 = vmatprep.subr.mxu0 0.0
    %196 = vmatpush1.msra.mxu0 0.0
    %197 = vmatprep.subr.mxu0 0.0
    %198 = vmatpush1.msra.mxu0 0.0
    %199 = vmatprep.subr.mxu0 0.0
    %200 = vmatpush1.msra.mxu0 0.0
    %201 = vmatprep.mubr.f32.mxu0 0.0
    %202 = vmatmul.mubr.f32.gmra.mrb[0].mxu0 %v132
    %v203 = vpop.f32.mrb[0].mxu0
    %v204 = vadd.f32 %v99, %v203
    %v205 = vpop.f32.mrb[0].mxu0
    %206 = vmatprep.mubr.f32.mxu0 0.0
    %207 = vmatmul.mubr.f32.gmra.mrb[0].mxu0 %v135
    %v208 = vpop.f32.mrb[0].mxu0
    %v209 = vadd.f32 %v104, %v208
    %v210 = vpop.f32.mrb[0].mxu0
    %211 = vdwg.mxu0
    %v212 = vmax.f32 %v204, 0.0
    %v213 = vmax.f32 %v209, 0.0
    %214 = vset.pattern.permute.xlu0 3
    %215 = vperm.xlu0 %214, %v74
    %v216 = vpop.permute.xlu0 %215
    %218 = vset.pattern.permute.xlu0 3
    %219 = vperm.xlu0 %218, %v75
    %v220 = vpop.permute.xlu0 %219
    %vm222 = vcmask 130048
    %v224 = vsel %vm222, %v76, 0
    %v227 = vsel %vm222, %v77, 0
    %229 = vmatprep.subr.mxu0 0.0
    %230 = vmatpush1.msra.mxu0 %v212
    %231 = vmatprep.subr.mxu0 0.0
    %232 = vmatpush1.msra.mxu0 %v213
    %233 = vmatprep.subr.mxu0 0.0
    %234 = vmatpush1.msra.mxu0 0.0
    %235 = vmatprep.subr.mxu0 0.0
    %236 = vmatpush1.msra.mxu0 0.0
    %237 = vmatprep.subr.mxu0 0.0
    %238 = vmatpush1.msra.mxu0 0.0
    %239 = vmatprep.subr.mxu0 0.0
    %240 = vmatpush1.msra.mxu0 0.0
    %241 = vmatprep.subr.mxu0 0.0
    %242 = vmatpush1.msra.mxu0 0.0
    %243 = vmatprep.subr.mxu0 0.0
    %244 = vmatpush1.msra.mxu0 0.0
    %245 = vmatprep.subr.mxu0 0.0
    %246 = vmatpush1.msra.mxu0 0.0
    %247 = vmatprep.subr.mxu0 0.0
    %248 = vmatpush1.msra.mxu0 0.0
    %249 = vmatprep.subr.mxu0 0.0
    %250 = vmatpush1.msra.mxu0 0.0
    %251 = vmatprep.subr.mxu0 0.0
    %252 = vmatpush1.msra.mxu0 0.0
    %253 = vmatprep.subr.mxu0 0.0
    %254 = vmatpush1.msra.mxu0 0.0
    %255 = vmatprep.subr.mxu0 0.0
    %256 = vmatpush1.msra.mxu0 0.0
    %257 = vmatprep.subr.mxu0 0.0
    %258 = vmatpush1.msra.mxu0 0.0
    %259 = vmatprep.subr.mxu0 0.0
    %260 = vmatpush1.msra.mxu0 0.0
    %261 = vmatprep.subr.mxu0 0.0
    %262 = vmatpush1.msra.mxu0 0.0
    %263 = vmatprep.subr.mxu0 0.0
    %264 = vmatpush1.msra.mxu0 0.0
    %265 = vmatprep.subr.mxu0 0.0
    %266 = vmatpush1.msra.mxu0 0.0
    %267 = vmatprep.subr.mxu0 0.0
    %268 = vmatpush1.msra.mxu0 0.0
    %269 = vmatprep.subr.mxu0 0.0
    %270 = vmatpush1.msra.mxu0 0.0
    %271 = vmatprep.subr.mxu0 0.0
    %272 = vmatpush1.msra.mxu0 0.0
    %273 = vmatprep.subr.mxu0 0.0
    %274 = vmatpush1.msra.mxu0 0.0
    %275 = vmatprep.subr.mxu0 0.0
    %276 = vmatpush1.msra.mxu0 0.0
    %277 = vmatprep.subr.mxu0 0.0
    %278 = vmatpush1.msra.mxu0 0.0
    %279 = vmatprep.subr.mxu0 0.0
    %280 = vmatpush1.msra.mxu0 0.0
    %281 = vmatprep.subr.mxu0 0.0
    %282 = vmatpush1.msra.mxu0 0.0
    %283 = vmatprep.subr.mxu0 0.0
    %284 = vmatpush1.msra.mxu0 0.0
    %285 = vmatprep.subr.mxu0 0.0
    %286 = vmatpush1.msra.mxu0 0.0
    %287 = vmatprep.subr.mxu0 0.0
    %288 = vmatpush1.msra.mxu0 0.0
    %289 = vmatprep.subr.mxu0 0.0
    %290 = vmatpush1.msra.mxu0 0.0
    %291 = vmatprep.subr.mxu0 0.0
    %292 = vmatpush1.msra.mxu0 0.0
    %293 = vmatprep.mubr.f32.mxu0 0.0
    %294 = vmatmul.mubr.f32.gmra.mrb[0].mxu0 %v224
    %v295 = vpop.f32.mrb[0].mxu0
    %v296 = vadd.f32 %v216, %v295
    %v297 = vpop.f32.mrb[0].mxu0
    %298 = vmatprep.mubr.f32.mxu0 0.0
    %299 = vmatmul.mubr.f32.gmra.mrb[0].mxu0 %v227
    %v300 = vpop.f32.mrb[0].mxu0
    %v301 = vadd.f32 %v220, %v300
    %v302 = vpop.f32.mrb[0].mxu0
    %303 = vdwg.mxu0
    %v304 = vlaneseq
    %v305 = vshrl.u32 %v304, 7
    %v306 = vsub.s32 0, %v305
    %v307 = vrot.slane %v78, %v306
    %v308 = vmul.f32 %v296, %v307
    %v309 = vmul.f32 %v301, %v307
    %vm310 = vcmask 80896
    %v311 = vsel %vm310, %v308, 0.0
    %312 = vadd.xlane.f32.xlu0 %v311
    %v313 = vpop.xlane.xlu0 %312
    %v314 = vsel %vm310, %v309, 0.0
    %315 = vadd.xlane.f32.xlu0 %v314
    %v316 = vpop.xlane.xlu0 %315
    %v318 = vlaneseq
    %v319 = vshrl.u32 %v318, 7
    %v320 = vsub.s32 0, %v319
    %v321 = vrot.slane %v79, %v320
    %v323 = vadd.f32 %v313, %v321
    %v324 = vadd.f32 %v316, %v321
    %v325 = vxor.u32 %v323, 2147483648
    %v326 = vxor.u32 %v324, 2147483648
    %v327 = vmul.f32 %v325, 1.442695
    %v328 = vpow.pop %v327
    %v329 = vmul.f32 %v326, 1.442695
    %v330 = vpow.pop %v329
    %v331 = vadd.f32 %v328, 1.0
    %v332 = vadd.f32 %v330, 1.0
    %v333 = vrcp.pop %v331
    %v334 = vmul.f32 1.0, %v333
    %v335 = vrcp.pop %v332
    %v336 = vmul.f32 1.0, %v335
    %v337 = vlaneseq
    %v338 = vand.u32 %v337, 127
    %vm339 = vcmp.ge.s32.totalorder %v338, 8
    %v340 = vsel %vm339, 1, 0
    %v341 = vcvt.s32.f32 %v340
    %343 = vset.pattern.permute.xlu0 0
    %344 = vperm.xlu0 %343, %v334
    %v345 = vpop.permute.xlu0 %344
    %348 = vset.pattern.permute.xlu0 0
    %349 = vperm.xlu0 %348, %v336
    %v350 = vpop.permute.xlu0 %349
    %v352 = vmul.f32 %v345, %v341
    %v353 = vmul.f32 %v350, %v341
    %v354 = vadd.f32 %v72, %v352
    %v355 = vadd.f32 %v73, %v353
    %vm356 = vcmp.ge.s32.totalorder %v338, 4
    %v357 = vsel %vm356, 1, 0
    %v358 = vcvt.s32.f32 %v357
    %v359 = vld [vmem:[#allocation4] sm:$0xff]
    %v360 = vld [vmem:[#allocation4 + $0x8] sm:$0xff]
    %363 = vrot.lane.b32.xlu0 %v354, 127
    %v364 = vpop.permute.xlu0 %363
    %365 = vrot.lane.b32.xlu0 %v355, 127
    %v366 = vpop.permute.xlu0 %365
    %367 = vrot.lane.b32.xlu0 %v354, 126
    %v368 = vpop.permute.xlu0 %367
    %369 = vrot.lane.b32.xlu0 %v355, 126
    %v370 = vpop.permute.xlu0 %369
    %371 = vset.pattern.permute.xlu0 1
    %372 = vperm.xlu0 %371, %v74
    %v373 = vpop.permute.xlu0 %372
    %375 = vset.pattern.permute.xlu0 1
    %376 = vperm.xlu0 %375, %v75
    %v377 = vpop.permute.xlu0 %376
    %379 = vrot.lane.b32.xlu0 %v364, 126
    %v380 = vpop.permute.xlu0 %379
    %381 = vrot.lane.b32.xlu0 %v366, 126
    %v382 = vpop.permute.xlu0 %381
    %383 = vrot.lane.b32.xlu0 %v368, 126
    %v384 = vpop.permute.xlu0 %383
    %385 = vrot.lane.b32.xlu0 %v370, 126
    %v386 = vpop.permute.xlu0 %385
    %vm393 = vcmask 392192
    %v395 = vsel %vm393, %v359, 0
    %v398 = vsel %vm393, %v360, 0
    %400 = vmatprep.subr.mxu0 0.0
    %401 = vmatpush1.msra.mxu0 %v368
    %402 = vmatprep.subr.mxu0 0.0
    %403 = vmatpush1.msra.mxu0 %v370
    %404 = vmatprep.subr.mxu0 0.0
    %405 = vmatpush1.msra.mxu0 %v380
    %406 = vmatprep.subr.mxu0 0.0
    %407 = vmatpush1.msra.mxu0 %v382
    %408 = vmatprep.subr.mxu0 0.0
    %409 = vmatpush1.msra.mxu0 %v384
    %410 = vmatprep.subr.mxu0 0.0
    %411 = vmatpush1.msra.mxu0 %v386
    %412 = vmatprep.subr.mxu0 0.0
    %413 = vmatpush1.msra.mxu0 0.0
    %414 = vmatprep.subr.mxu0 0.0
    %415 = vmatpush1.msra.mxu0 0.0
    %416 = vmatprep.subr.mxu0 0.0
    %417 = vmatpush1.msra.mxu0 0.0
    %418 = vmatprep.subr.mxu0 0.0
    %419 = vmatpush1.msra.mxu0 0.0
    %420 = vmatprep.subr.mxu0 0.0
    %421 = vmatpush1.msra.mxu0 0.0
    %422 = vmatprep.subr.mxu0 0.0
    %423 = vmatpush1.msra.mxu0 0.0
    %424 = vmatprep.subr.mxu0 0.0
    %425 = vmatpush1.msra.mxu0 0.0
    %426 = vmatprep.subr.mxu0 0.0
    %427 = vmatpush1.msra.mxu0 0.0
    %428 = vmatprep.subr.mxu0 0.0
    %429 = vmatpush1.msra.mxu0 0.0
    %430 = vmatprep.subr.mxu0 0.0
    %431 = vmatpush1.msra.mxu0 0.0
    %432 = vmatprep.subr.mxu0 0.0
    %433 = vmatpush1.msra.mxu0 0.0
    %434 = vmatprep.subr.mxu0 0.0
    %435 = vmatpush1.msra.mxu0 0.0
    %436 = vmatprep.subr.mxu0 0.0
    %437 = vmatpush1.msra.mxu0 0.0
    %438 = vmatprep.subr.mxu0 0.0
    %439 = vmatpush1.msra.mxu0 0.0
    %440 = vmatprep.subr.mxu0 0.0
    %441 = vmatpush1.msra.mxu0 0.0
    %442 = vmatprep.subr.mxu0 0.0
    %443 = vmatpush1.msra.mxu0 0.0
    %444 = vmatprep.subr.mxu0 0.0
    %445 = vmatpush1.msra.mxu0 0.0
    %446 = vmatprep.subr.mxu0 0.0
    %447 = vmatpush1.msra.mxu0 0.0
    %448 = vmatprep.subr.mxu0 0.0
    %449 = vmatpush1.msra.mxu0 0.0
    %450 = vmatprep.subr.mxu0 0.0
    %451 = vmatpush1.msra.mxu0 0.0
    %452 = vmatprep.subr.mxu0 0.0
    %453 = vmatpush1.msra.mxu0 0.0
    %454 = vmatprep.subr.mxu0 0.0
    %455 = vmatpush1.msra.mxu0 0.0
    %456 = vmatprep.subr.mxu0 0.0
    %457 = vmatpush1.msra.mxu0 0.0
    %458 = vmatprep.subr.mxu0 0.0
    %459 = vmatpush1.msra.mxu0 0.0
    %460 = vmatprep.subr.mxu0 0.0
    %461 = vmatpush1.msra.mxu0 0.0
    %462 = vmatprep.subr.mxu0 0.0
    %463 = vmatpush1.msra.mxu0 0.0
    %464 = vmatprep.mubr.f32.mxu0 0.0
    %465 = vmatmul.mubr.f32.gmra.mrb[0].mxu0 %v395
    %v466 = vpop.f32.mrb[0].mxu0
    %v467 = vadd.f32 %v373, %v466
    %v468 = vpop.f32.mrb[0].mxu0
    %469 = vmatprep.mubr.f32.mxu0 0.0
    %470 = vmatmul.mubr.f32.gmra.mrb[0].mxu0 %v398
    %v471 = vpop.f32.mrb[0].mxu0
    %v472 = vadd.f32 %v377, %v471
    %v473 = vpop.f32.mrb[0].mxu0
    %474 = vdwg.mxu0
    %v475 = vmul.f32 %v467, %v358
    %v476 = vmul.f32 %v472, %v358
    %v477 = vmax.f32 %v475, 0.0
    %v478 = vmax.f32 %v476, 0.0
    %v479 = vld [vmem:[#allocation6] sm:$0xff]
    %v480 = vld [vmem:[#allocation6 + $0x8] sm:$0xff]
    %483 = vrot.lane.b32.xlu0 %v477, 126
    %v484 = vpop.permute.xlu0 %483
    %485 = vrot.lane.b32.xlu0 %v478, 126
    %v486 = vpop.permute.xlu0 %485
    %489 = vrot.lane.b32.xlu0 %v477, 124
    %v490 = vpop.permute.xlu0 %489
    %491 = vrot.lane.b32.xlu0 %v478, 124
    %v492 = vpop.permute.xlu0 %491
    %495 = vset.pattern.permute.xlu0 2
    %496 = vperm.xlu0 %495, %v74
    %v497 = vpop.permute.xlu0 %496
    %499 = vset.pattern.permute.xlu0 2
    %500 = vperm.xlu0 %499, %v75
    %v501 = vpop.permute.xlu0 %500
    %v504 = vsel %vm393, %v479, 0
    %v507 = vsel %vm393, %v480, 0
    %509 = vmatprep.subr.mxu0 0.0
    %510 = vmatpush1.msra.mxu0 %v477
    %511 = vmatprep.subr.mxu0 0.0
    %512 = vmatpush1.msra.mxu0 %v478
    %513 = vmatprep.subr.mxu0 0.0
    %514 = vmatpush1.msra.mxu0 %v484
    %515 = vmatprep.subr.mxu0 0.0
    %516 = vmatpush1.msra.mxu0 %v486
    %517 = vmatprep.subr.mxu0 0.0
    %518 = vmatpush1.msra.mxu0 %v490
    %519 = vmatprep.subr.mxu0 0.0
    %520 = vmatpush1.msra.mxu0 %v492
    %521 = vmatprep.subr.mxu0 0.0
    %522 = vmatpush1.msra.mxu0 0.0
    %523 = vmatprep.subr.mxu0 0.0
    %524 = vmatpush1.msra.mxu0 0.0
    %525 = vmatprep.subr.mxu0 0.0
    %526 = vmatpush1.msra.mxu0 0.0
    %527 = vmatprep.subr.mxu0 0.0
    %528 = vmatpush1.msra.mxu0 0.0
    %529 = vmatprep.subr.mxu0 0.0
    %530 = vmatpush1.msra.mxu0 0.0
    %531 = vmatprep.subr.mxu0 0.0
    %532 = vmatpush1.msra.mxu0 0.0
    %533 = vmatprep.subr.mxu0 0.0
    %534 = vmatpush1.msra.mxu0 0.0
    %535 = vmatprep.subr.mxu0 0.0
    %536 = vmatpush1.msra.mxu0 0.0
    %537 = vmatprep.subr.mxu0 0.0
    %538 = vmatpush1.msra.mxu0 0.0
    %539 = vmatprep.subr.mxu0 0.0
    %540 = vmatpush1.msra.mxu0 0.0
    %541 = vmatprep.subr.mxu0 0.0
    %542 = vmatpush1.msra.mxu0 0.0
    %543 = vmatprep.subr.mxu0 0.0
    %544 = vmatpush1.msra.mxu0 0.0
    %545 = vmatprep.subr.mxu0 0.0
    %546 = vmatpush1.msra.mxu0 0.0
    %547 = vmatprep.subr.mxu0 0.0
    %548 = vmatpush1.msra.mxu0 0.0
    %549 = vmatprep.subr.mxu0 0.0
    %550 = vmatpush1.msra.mxu0 0.0
    %551 = vmatprep.subr.mxu0 0.0
    %552 = vmatpush1.msra.mxu0 0.0
    %553 = vmatprep.subr.mxu0 0.0
    %554 = vmatpush1.msra.mxu0 0.0
    %555 = vmatprep.subr.mxu0 0.0
    %556 = vmatpush1.msra.mxu0 0.0
    %557 = vmatprep.subr.mxu0 0.0
    %558 = vmatpush1.msra.mxu0 0.0
    %559 = vmatprep.subr.mxu0 0.0
    %560 = vmatpush1.msra.mxu0 0.0
    %561 = vmatprep.subr.mxu0 0.0
    %562 = vmatpush1.msra.mxu0 0.0
    %563 = vmatprep.subr.mxu0 0.0
    %564 = vmatpush1.msra.mxu0 0.0
    %565 = vmatprep.subr.mxu0 0.0
    %566 = vmatpush1.msra.mxu0 0.0
    %567 = vmatprep.subr.mxu0 0.0
    %568 = vmatpush1.msra.mxu0 0.0
    %569 = vmatprep.subr.mxu0 0.0
    %570 = vmatpush1.msra.mxu0 0.0
    %571 = vmatprep.subr.mxu0 0.0
    %572 = vmatpush1.msra.mxu0 0.0
    %573 = vmatprep.mubr.f32.mxu0 0.0
    %574 = vmatmul.mubr.f32.gmra.mrb[0].mxu0 %v504
    %v575 = vpop.f32.mrb[0].mxu0
    %v576 = vadd.f32 %v497, %v575
    %v577 = vpop.f32.mrb[0].mxu0
    %578 = vmatprep.mubr.f32.mxu0 0.0
    %579 = vmatmul.mubr.f32.gmra.mrb[0].mxu0 %v507
    %v580 = vpop.f32.mrb[0].mxu0
    %v581 = vadd.f32 %v501, %v580
    %v582 = vpop.f32.mrb[0].mxu0
    %583 = vdwg.mxu0
    %v584 = vmax.f32 %v576, 0.0
    %v585 = vmax.f32 %v581, 0.0
    %586 = vmatprep.subr.mxu0 0.0
    %587 = vmatpush1.msra.mxu0 %v584
    %588 = vmatprep.subr.mxu0 0.0
    %589 = vmatpush1.msra.mxu0 %v585
    %590 = vmatprep.subr.mxu0 0.0
    %591 = vmatpush1.msra.mxu0 0.0
    %592 = vmatprep.subr.mxu0 0.0
    %593 = vmatpush1.msra.mxu0 0.0
    %594 = vmatprep.subr.mxu0 0.0
    %595 = vmatpush1.msra.mxu0 0.0
    %596 = vmatprep.subr.mxu0 0.0
    %597 = vmatpush1.msra.mxu0 0.0
    %598 = vmatprep.subr.mxu0 0.0
    %599 = vmatpush1.msra.mxu0 0.0
    %600 = vmatprep.subr.mxu0 0.0
    %601 = vmatpush1.msra.mxu0 0.0
    %602 = vmatprep.subr.mxu0 0.0
    %603 = vmatpush1.msra.mxu0 0.0
    %604 = vmatprep.subr.mxu0 0.0
    %605 = vmatpush1.msra.mxu0 0.0
    %606 = vmatprep.subr.mxu0 0.0
    %607 = vmatpush1.msra.mxu0 0.0
    %608 = vmatprep.subr.mxu0 0.0
    %609 = vmatpush1.msra.mxu0 0.0
    %610 = vmatprep.subr.mxu0 0.0
    %611 = vmatpush1.msra.mxu0 0.0
    %612 = vmatprep.subr.mxu0 0.0
    %613 = vmatpush1.msra.mxu0 0.0
    %614 = vmatprep.subr.mxu0 0.0
    %615 = vmatpush1.msra.mxu0 0.0
    %616 = vmatprep.subr.mxu0 0.0
    %617 = vmatpush1.msra.mxu0 0.0
    %618 = vmatprep.subr.mxu0 0.0
    %619 = vmatpush1.msra.mxu0 0.0
    %620 = vmatprep.subr.mxu0 0.0
    %621 = vmatpush1.msra.mxu0 0.0
    %622 = vmatprep.subr.mxu0 0.0
    %623 = vmatpush1.msra.mxu0 0.0
    %624 = vmatprep.subr.mxu0 0.0
    %625 = vmatpush1.msra.mxu0 0.0
    %626 = vmatprep.subr.mxu0 0.0
    %627 = vmatpush1.msra.mxu0 0.0
    %628 = vmatprep.subr.mxu0 0.0
    %629 = vmatpush1.msra.mxu0 0.0
    %630 = vmatprep.subr.mxu0 0.0
    %631 = vmatpush1.msra.mxu0 0.0
    %632 = vmatprep.subr.mxu0 0.0
    %633 = vmatpush1.msra.mxu0 0.0
    %634 = vmatprep.subr.mxu0 0.0
    %635 = vmatpush1.msra.mxu0 0.0
    %636 = vmatprep.subr.mxu0 0.0
    %637 = vmatpush1.msra.mxu0 0.0
    %638 = vmatprep.subr.mxu0 0.0
    %639 = vmatpush1.msra.mxu0 0.0
    %640 = vmatprep.subr.mxu0 0.0
    %641 = vmatpush1.msra.mxu0 0.0
    %642 = vmatprep.subr.mxu0 0.0
    %643 = vmatpush1.msra.mxu0 0.0
    %644 = vmatprep.subr.mxu0 0.0
    %645 = vmatpush1.msra.mxu0 0.0
    %646 = vmatprep.subr.mxu0 0.0
    %647 = vmatpush1.msra.mxu0 0.0
    %648 = vmatprep.subr.mxu0 0.0
    %649 = vmatpush1.msra.mxu0 0.0
    %650 = vmatprep.mubr.f32.mxu0 0.0
    %651 = vmatmul.mubr.f32.gmra.mrb[0].mxu0 %v224
    %v652 = vpop.f32.mrb[0].mxu0
    %v653 = vadd.f32 %v216, %v652
    %v654 = vpop.f32.mrb[0].mxu0
    %655 = vmatprep.mubr.f32.mxu0 0.0
    %656 = vmatmul.mubr.f32.gmra.mrb[0].mxu0 %v227
    %v657 = vpop.f32.mrb[0].mxu0
    %v658 = vadd.f32 %v220, %v657
    %v659 = vpop.f32.mrb[0].mxu0
    %660 = vdwg.mxu0
    %v661 = vlaneseq
    %v662 = vshrl.u32 %v661, 7
    %v663 = vsub.s32 1, %v662
    %v664 = vrot.slane %v78, %v663
    %v665 = vmul.f32 %v653, %v664
    %v666 = vmul.f32 %v658, %v664
    %v667 = vsel %vm310, %v665, 0.0
    %668 = vadd.xlane.f32.xlu0 %v667
    %v669 = vpop.xlane.xlu0 %668
    %v670 = vsel %vm310, %v666, 0.0
    %671 = vadd.xlane.f32.xlu0 %v670
    %v672 = vpop.xlane.xlu0 %671
    %v673 = vadd.f32 %v669, %v321
    %v674 = vadd.f32 %v672, %v321
    %v675 = vxor.u32 %v673, 2147483648
    %v676 = vxor.u32 %v674, 2147483648
    %v677 = vmul.f32 %v675, 1.442695
    %v678 = vpow.pop %v677
    %v679 = vmul.f32 %v676, 1.442695
    %v680 = vpow.pop %v679
    %v681 = vadd.f32 %v678, 1.0
    %v682 = vadd.f32 %v680, 1.0
    %v683 = vrcp.pop %v681
    %v684 = vmul.f32 1.0, %v683
    %v685 = vrcp.pop %v682
    %v686 = vmul.f32 1.0, %v685
    %vm687 = vcmask 7168
    %688 = vst.msk [vmem:[%s8] sm:$0xff] %vm687, %v334
    %689 = vst.msk [vmem:[%s8 + $0x8] sm:$0xff] %vm687, %v336
    %692 = vrot.lane.b32.xlu0 %v684, 127
    %v693 = vpop.permute.xlu0 %692
    %694 = vrot.lane.b32.xlu0 %v686, 127
    %v695 = vpop.permute.xlu0 %694
    %698 = vst.msk [vmem:[%s9] sm:$0xff] %vm687, %v693
    %699 = vst.msk [vmem:[%s9 + $0x8] sm:$0xff] %vm687, %v695
    // Predicated region
    $region46: #{tpu_custom_call.1} parent=1 // pred_check
      _
    $region47: #{tpu_custom_call.1} parent=1 // pred_check_branch
      %701 = sbr.rel (0) target = $region49
    $region48: #{tpu_custom_call.1} parent=1 // pred_region
      _
    $region49: #{tpu_custom_call.1} parent=1 // pred_fallthru
      _
    // Predicated region
    $region50: #{tpu_custom_call.1} parent=1 // pred_check
      _
    $region51: #{tpu_custom_call.1} parent=1 // pred_check_branch
      %703 = sbr.rel (0) target = $region53
    $region52: #{tpu_custom_call.1} parent=1 // pred_region
      _
    $region53: #{tpu_custom_call.1} parent=1 // pred_fallthru
      _
    // Predicated region
    $region54: #{tpu_custom_call.1} parent=1 // pred_check
      _
    $region55: #{tpu_custom_call.1} parent=1 // pred_check_branch
      %705 = sbr.rel (0) target = $region57
    $region56: #{tpu_custom_call.1} parent=1 // pred_region
      _
    $region57: #{tpu_custom_call.1} parent=1 // pred_fallthru
      _
    // Predicated region
    $region58: #{tpu_custom_call.1} parent=1 // pred_check
      _
    $region59: #{tpu_custom_call.1} parent=1 // pred_check_branch
      %707 = sbr.rel (0) target = $region61
    $region60: #{tpu_custom_call.1} parent=1 // pred_region
      _
    $region61: #{tpu_custom_call.1} parent=1 // pred_fallthru
      _
    %708 = vsyncpa [#allocation3], 1
    %709 = vsyncpa [#allocation5], 1

</llo_original>
